<compile_context>
chip_gen: v5e
topology: v5e:2x2
jax: 0.10.0
libtpu: 0.0.40
codegen_flags: <defaults>
</compile_context>

<pallas_src>
import math
import jax
import jax.numpy as jnp
from jax import lax
from jax.experimental import pallas as pl
from jax.experimental.pallas import tpu as pltpu

SUBLANE = 8
SMALL_BATCH_FALLBACK = 64  # below this, a fused XLA GEMM beats kernel overhead


def _round_up(x, m):
    return ((x + m - 1) // m) * m


# ----------------------------------------------------------------------------
# Pallas kernels: fused multi-head projection (all heads packed column-wise)
#   with word:    y = hn @ W_hn + word @ W_word + b   (torch concat fused as 2 dots)
#   without word: y = hn @ W_hn + b
# ----------------------------------------------------------------------------
def _fused_heads_word_kernel(hn_ref, word_ref, w_hn_ref, w_word_ref, b_ref, o_ref):
    acc = jnp.dot(hn_ref[...], w_hn_ref[...], preferred_element_type=jnp.float32)
    acc = acc + jnp.dot(word_ref[...], w_word_ref[...],
                        preferred_element_type=jnp.float32)
    o_ref[...] = (acc + b_ref[...]).astype(o_ref.dtype)


def _fused_heads_kernel(hn_ref, w_hn_ref, b_ref, o_ref):
    acc = jnp.dot(hn_ref[...], w_hn_ref[...], preferred_element_type=jnp.float32)
    o_ref[...] = (acc + b_ref[...]).astype(o_ref.dtype)


def _pick_tile_b(B):
    # Aim for >=2 grid steps (v7x has 2 TensorCores; no-op on v5e/v6e) while
    # keeping each step's DMAs chunky. VMEM use is tiny (<1 MiB double-buffered)
    # at tile_b=1024 on every generation, including v7x's 64 MiB.
    half = _round_up(max(-(-B // 2), 1), SUBLANE)
    return max(SUBLANE, min(1024, half))


def multihead_linear(hn, word, w_hn, w_word, b, *, use_word):
    """Fused projection for all heads. Returns packed (B, total_out) output."""
    B, d_in = hn.shape
    n_out = w_hn.shape[1]                 # real packed width (22), NOT lane-padded

    tile_b = _pick_tile_b(B)
    grid = (pl.cdiv(B, tile_b),)          # ragged last block clamped by Pallas
    out_shape = jax.ShapeDtypeStruct((B, n_out), jnp.float32)
    out_spec = pl.BlockSpec((tile_b, n_out), lambda i: (i, 0))
    cparams = pltpu.CompilerParams(dimension_semantics=("parallel",))

    if use_word:
        return pl.pallas_call(
            _fused_heads_word_kernel,
            out_shape=out_shape,
            grid=grid,
            in_specs=[
                pl.BlockSpec((tile_b, d_in), lambda i: (i, 0)),
                # word is (B, 1, d_in): squeeze the size-1 dim inside the spec
                # (no wrapper-side squeeze copy).
                pl.BlockSpec((tile_b, pl.Squeezed(), d_in), lambda i: (i, 0, 0)),
                pl.BlockSpec((d_in, n_out), lambda i: (0, 0)),
                pl.BlockSpec((d_in, n_out), lambda i: (0, 0)),
                pl.BlockSpec((1, n_out), lambda i: (0, 0)),
            ],
            out_specs=out_spec,
            compiler_params=cparams,
        )(hn, word, w_hn, w_word, b)

    return pl.pallas_call(
        _fused_heads_kernel,
        out_shape=out_shape,
        grid=grid,
        in_specs=[
            pl.BlockSpec((tile_b, d_in), lambda i: (i, 0)),
            pl.BlockSpec((d_in, n_out), lambda i: (0, 0)),
            pl.BlockSpec((1, n_out), lambda i: (0, 0)),
        ],
        out_specs=out_spec,
        compiler_params=cparams,
    )(hn, w_hn, b)


# ----------------------------------------------------------------------------
# Parameter setup (deterministic, mirrors nn.Linear default init ranges)
# ----------------------------------------------------------------------------
def init_linear(key, in_dim, out_dim):
    kw, kb = jax.random.split(key)
    bound = 1.0 / math.sqrt(in_dim)
    # stored as (in, out) so the kernel computes h @ W (== x @ weight.T in torch)
    W = jax.random.uniform(kw, (in_dim, out_dim), jnp.float32, -bound, bound)
    b = jax.random.uniform(kb, (out_dim,), jnp.float32, -bound, bound)
    return W, b


class MultiTaskPredictorVerbsPallas:
    def __init__(self, input_dim, dims, use_emo, use_word=False, key=None):
        self.input_dim = input_dim
        self.use_emo = use_emo
        self.use_word = use_word
        size = 2 * input_dim if use_word else input_dim
        self.size = size

        # Head widths and ORDER exactly as the torch module builds/consumes them:
        #   len(set(dims) - {'Emo','power','agency'}) plain heads of 3,
        #   then power (4), then agency (4); emo head (8) is appended last in forward.
        n_plain = len(set(dims) - {'Emo', 'power', 'agency'})
        head_dims = [3] * n_plain
        if 'power' in dims:
            head_dims.append(4)
        if 'agency' in dims:
            head_dims.append(4)
        if use_emo:
            head_dims.append(8)
        self.head_dims = head_dims
        self.total_out = sum(head_dims)

        key = jax.random.PRNGKey(42) if key is None else key
        keys = jax.random.split(key, len(head_dims))
        Ws, bs = [], []
        for k, od in zip(keys, head_dims):
            W, b = init_linear(k, size, od)
            Ws.append(W)
            bs.append(b)

        # Pack all heads column-wise; keep the REAL width (22) — no lane padding.
        self.W_packed = jnp.concatenate(Ws, axis=1)          # (size, total_out)
        self.b_packed = jnp.concatenate(bs, axis=0)          # (total_out,)
        self.b_packed_row = self.b_packed[None, :]           # (1, total_out)

        if use_word:
            # Row-split the packed weight so the concat becomes two dots.
            self.W_hn = self.W_packed[:input_dim]             # (input_dim, total_out)
            self.W_word = self.W_packed[input_dim:]           # (input_dim, total_out)
        else:
            self.W_hn = self.W_packed
            self.W_word = None

    def forward_packed(self, hn, word):
        """Packed (B, total_out) output — preferred for downstream consumers
        to avoid narrow per-head column slices."""
        B = hn.shape[0]
        if B < SMALL_BATCH_FALLBACK:
            # Launch-overhead-bound regime: plain XLA GEMM (fuses into neighbors).
            if self.use_word:
                h_res = jnp.concatenate([hn, word[:, 0, :]], axis=1)
            else:
                h_res = hn
            return jnp.dot(h_res, self.W_packed,
                           precision=lax.Precision.HIGHEST) + self.b_packed_row
        return multihead_linear(hn, word, self.W_hn, self.W_word,
                                self.b_packed_row, use_word=self.use_word)

    def __call__(self, hn, word):
        # hn: (B, input_dim); word: (B, 1, input_dim) when use_word=True
        y_all = self.forward_packed(hn, word)
        # Split back into the per-head list (PyTorch module return contract).
        outs = []
        off = 0
        for od in self.head_dims:
            outs.append(y_all[:, off:off + od])
            off += od
        return outs


# ----------------------------------------------------------------------------
# Reference (plain JAX) for sanity check
# ----------------------------------------------------------------------------
def reference_forward(model, hn, word):
    if model.use_word:
        h_res = jnp.concatenate([hn, jnp.squeeze(word, axis=1)], axis=1)
    else:
        h_res = hn
    y_all = jnp.dot(h_res, model.W_packed,
                    precision=lax.Precision.HIGHEST) + model.b_packed[None, :]
    outs = []
    off = 0
    for od in model.head_dims:
        outs.append(y_all[:, off:off + od])
        off += od
    return outs


if __name__ == "__main__":
    key = jax.random.PRNGKey(0)
    k_hn, k_word, k_params, k_hn2, k_word2 = jax.random.split(key, 5)

    input_dim = 32
    dims = ['SocialValue', 'Polarity', 'power', 'agency']  # 2 plain + power + agency
    use_emo = True
    expected_dims = [3, 3, 4, 4, 8]

    model = MultiTaskPredictorVerbsPallas(input_dim, dims, use_emo,
                                          use_word=True, key=k_params)

    # --- small batch (module's typical call): XLA fallback path ---
    B_small = 2
    hn_s = jax.random.normal(k_hn, (B_small, input_dim), jnp.float32)
    word_s = jax.random.normal(k_word, (B_small, 1, input_dim), jnp.float32)
    outs_s = [jax.block_until_ready(o) for o in model(hn_s, word_s)]
    refs_s = reference_forward(model, hn_s, word_s)
    assert [o.shape for o in outs_s] == [(B_small, d) for d in expected_dims]
    for o, r in zip(outs_s, refs_s):
        assert jnp.allclose(o, r, atol=1e-5, rtol=1e-5)

    # --- larger ragged batch: Pallas kernel path (2 grid steps, clamped last
    #     block, only the 22 real output columns written to HBM) ---
    B_big = 200
    hn_b = jax.random.normal(k_hn2, (B_big, input_dim), jnp.float32)
    word_b = jax.random.normal(k_word2, (B_big, 1, input_dim), jnp.float32)
    outs_b = [jax.block_until_ready(o) for o in model(hn_b, word_b)]
    refs_b = reference_forward(model, hn_b, word_b)
    assert [o.shape for o in outs_b] == [(B_big, d) for d in expected_dims]
    for o, r in zip(outs_b, refs_b):
        assert jnp.allclose(o, r, atol=1e-4, rtol=1e-4)

    # --- use_word=False variant: single-dot Pallas kernel ---
    model_nw = MultiTaskPredictorVerbsPallas(input_dim, dims, use_emo,
                                             use_word=False, key=k_params)
    B_nw = 96
    hn_nw = jax.random.normal(k_hn, (B_nw, input_dim), jnp.float32)
    outs_nw = [jax.block_until_ready(o) for o in model_nw(hn_nw, None)]
    refs_nw = reference_forward(model_nw, hn_nw, None)
    assert [o.shape for o in outs_nw] == [(B_nw, d) for d in expected_dims]
    for o, r in zip(outs_nw, refs_nw):
        assert jnp.allclose(o, r, atol=1e-4, rtol=1e-4)

    print("KERNEL_OK")
</pallas_src>

<mosaic_0001>
module attributes {stable_mosaic.version = 11 : i64} {
  func.func @_fused_heads_word_kernel(%arg0: i32, %arg1: memref<104x32xf32, #tpu.memory_space<vmem>>, %arg2: memref<104x1x32xf32, #tpu.memory_space<vmem>>, %arg3: memref<32x22xf32, #tpu.memory_space<vmem>>, %arg4: memref<32x22xf32, #tpu.memory_space<vmem>>, %arg5: memref<1x22xf32, #tpu.memory_space<vmem>>, %arg6: memref<104x22xf32, #tpu.memory_space<vmem>>) attributes {dimension_semantics = [#tpu.dimension_semantics<parallel>], iteration_bounds = array<i64: 2>, scalar_prefetch = 0 : i64, scratch_operands = 0 : i64, tpu.core_type = #tpu.core_type<tc>, window_params = [{transform_indices = @transform_0, window_bounds = array<i64: 104, 32>}, {transform_indices = @transform_1, window_bounds = array<i64: 104, 1, 32>}, {pipeline_mode = #tpu.pipeline_mode<synchronous>, transform_indices = @transform_2, window_bounds = array<i64: 32, 22>}, {pipeline_mode = #tpu.pipeline_mode<synchronous>, transform_indices = @transform_3, window_bounds = array<i64: 32, 22>}, {pipeline_mode = #tpu.pipeline_mode<synchronous>, transform_indices = @transform_4, window_bounds = array<i64: 1, 22>}, {transform_indices = @transform_5, window_bounds = array<i64: 104, 22>}]} {
    %c0 = arith.constant 0 : index
    %c0_0 = arith.constant 0 : index
    %0 = vector.load %arg1[%c0, %c0_0] : memref<104x32xf32, #tpu.memory_space<vmem>>, vector<104x32xf32>
    %c0_1 = arith.constant 0 : index
    %c0_2 = arith.constant 0 : index
    %1 = vector.load %arg3[%c0_1, %c0_2] : memref<32x22xf32, #tpu.memory_space<vmem>>, vector<32x22xf32>
    %cst = arith.constant dense<0.000000e+00> : vector<104x22xf32>
    %2 = tpu.matmul %0, %1, %cst {dimension_numbers = #tpu.dot_dimension_numbers<[1], [0], [0], [1], [0, 0, 1, 1], [], []>} : vector<104x32xf32>, vector<32x22xf32>, vector<104x22xf32> -> vector<104x22xf32>
    %c0_3 = arith.constant 0 : index
    %c0_4 = arith.constant 0 : index
    %c0_5 = arith.constant 0 : index
    %3 = vector.load %arg2[%c0_3, %c0_4, %c0_5] : memref<104x1x32xf32, #tpu.memory_space<vmem>>, vector<104x1x32xf32>
    %4 = vector.shape_cast %3 : vector<104x1x32xf32> to vector<104x32xf32>
    %c0_6 = arith.constant 0 : index
    %c0_7 = arith.constant 0 : index
    %5 = vector.load %arg4[%c0_6, %c0_7] : memref<32x22xf32, #tpu.memory_space<vmem>>, vector<32x22xf32>
    %cst_8 = arith.constant dense<0.000000e+00> : vector<104x22xf32>
    %6 = tpu.matmul %4, %5, %cst_8 {dimension_numbers = #tpu.dot_dimension_numbers<[1], [0], [0], [1], [0, 0, 1, 1], [], []>} : vector<104x32xf32>, vector<32x22xf32>, vector<104x22xf32> -> vector<104x22xf32>
    %7 = arith.addf %2, %6 : vector<104x22xf32>
    %c0_9 = arith.constant 0 : index
    %c0_10 = arith.constant 0 : index
    %8 = vector.load %arg5[%c0_9, %c0_10] : memref<1x22xf32, #tpu.memory_space<vmem>>, vector<1x22xf32>
    %9 = vector.broadcast %8 : vector<1x22xf32> to vector<104x22xf32>
    %10 = arith.addf %7, %9 : vector<104x22xf32>
    %c0_11 = arith.constant 0 : index
    %c0_12 = arith.constant 0 : index
    %11 = vector.load %arg6[%c0_11, %c0_12] : memref<104x22xf32, #tpu.memory_space<vmem>>, vector<104x22xf32>
    tpu.vector_store %arg6[%c0_11, %c0_12], %10 {strides = array<i32>} : memref<104x22xf32, #tpu.memory_space<vmem>>, vector<104x22xf32>,
    return
  }
  func.func @transform_0(%arg0: i32) -> (i32, i32) {
    %c0_i32 = arith.constant 0 : i32
    %c0_i32_0 = arith.constant 0 : i32
    return %arg0, %c0_i32 : i32, i32
  }
  func.func @transform_1(%arg0: i32) -> (i32, i32, i32) {
    %c0_i32 = arith.constant 0 : i32
    %c0_i32_0 = arith.constant 0 : i32
    %c0_i32_1 = arith.constant 0 : i32
    return %arg0, %c0_i32, %c0_i32_0 : i32, i32, i32
  }
  func.func @transform_2(%arg0: i32) -> (i32, i32) {
    %c0_i32 = arith.constant 0 : i32
    %c0_i32_0 = arith.constant 0 : i32
    %c0_i32_1 = arith.constant 0 : i32
    return %c0_i32, %c0_i32_0 : i32, i32
  }
  func.func @transform_3(%arg0: i32) -> (i32, i32) {
    %c0_i32 = arith.constant 0 : i32
    %c0_i32_0 = arith.constant 0 : i32
    %c0_i32_1 = arith.constant 0 : i32
    return %c0_i32, %c0_i32_0 : i32, i32
  }
  func.func @transform_4(%arg0: i32) -> (i32, i32) {
    %c0_i32 = arith.constant 0 : i32
    %c0_i32_0 = arith.constant 0 : i32
    %c0_i32_1 = arith.constant 0 : i32
    return %c0_i32, %c0_i32_0 : i32, i32
  }
  func.func @transform_5(%arg0: i32) -> (i32, i32) {
    %c0_i32 = arith.constant 0 : i32
    %c0_i32_0 = arith.constant 0 : i32
    return %arg0, %c0_i32 : i32, i32
  }
}

</mosaic_0001>

<llo_original>
// kernel: tpu_custom_call.1
$region0: #{tpu_custom_call.1}
  #allocation0 [shape = 'u32[]', space=smem, size = 0x4, offset = 0x4, fixed_abs, tag = 'smem constant byte address 0x4 - core index']
  #allocation1 [shape = 'u32[72,128]{1,0:T(1,128)}', space=vmem, size = 0x9000, scoped, tag = 'internal scratch']
  %s0 = inlined_call_operand.vmem [shape: f32[200,32], index: 0, kind: input, shape index: {}]
  %s1 = inlined_call_operand.vmem [shape: f32[200,1,32], index: 1, kind: input, shape index: {}]
  %s2 = inlined_call_operand.vmem [shape: f32[32,22], index: 2, kind: input, shape index: {}]
  %s3 = inlined_call_operand.vmem [shape: f32[32,22], index: 3, kind: input, shape index: {}]
  %s4 = inlined_call_operand.vmem [shape: f32[1,22], index: 4, kind: input, shape index: {}]
  %s5 = inlined_call_operand.vmem [shape: f32[200,22], index: 5, kind: output, shape index: {}]
  %s6 = sld [smem:[#allocation0]]
  $region101: #{tpu_custom_call.1} parent=0
    _
  %s8 = ssub.s32 1, %s6
  %s9 = scalar_select 0, %s8, %s6
  $region1: #{tpu_custom_call.1} parent=0
    #allocation2 [shape = 'u8[106496]{0}', space=vmem, size = 0x1a000, scoped, tag = 'output window, operand 0']
    loop: start=0, step=1, limit=4
    $region2: #{tpu_custom_call.1} parent=1 // loop_pre_header
      _
    $region3: #{tpu_custom_call.1} parent=1 // loop_header
      %s11 = sphi 0, %s15
      %p12 = scmp.ge.s32.totalorder %s11, 4
      %s21 = sphi 0, %s23
      %s24 = sphi 0, %s21
      %s25 = sphi 0, %s24
      %s41 = sphi 0, %s25
      %s47 = sphi 0, %s49
      %s50 = sphi 0, %s47
      %s51 = sphi 0, %s50
      %s67 = sphi 0, %s51
      %s71 = sphi 0, %s71
      %s73 = sphi 0, %s71
      %s74 = sphi 0, %s73
      %s88 = sphi 0, %s74
      %s92 = sphi 0, %s92
      %s94 = sphi 0, %s92
      %s95 = sphi 0, %s94
      %s109 = sphi 0, %s95
      %s113 = sphi 0, %s113
      %s115 = sphi 0, %s113
      %s116 = sphi 0, %s115
      %s130 = sphi 0, %s116
      %s136 = sphi 0, %s138
      %s139 = sphi 0, %s136
      %s140 = sphi 0, %s139
      %s156 = sphi 0, %s140
    $region4: #{tpu_custom_call.1} parent=1 // loop_header_branch
      %14 = sbr.rel (%p12) target = $region8
    $region5: #{tpu_custom_call.1} parent=1 // loop_body
      %s16 = ssub.s32 %s11, 1
      %s17 = ssub.s32 %s11, 2
      %s18 = sadd.s32 %s11, 1
      %s19 = ssub.s32 %s11, %s18
      %p20 = scmp.eq.s32.totalorder %s19, 0
      %s22 = sadd.s32 %s21, 1
      %s23 = scalar_select %p20, %s21, %s22
      %p26 = pneg %p20
      %p27 = scmp.eq.s32.totalorder %s11, 1
      %p28 = por %p26, %p27
      %p29 = scmp.ne.s32.totalorder %s21, %s24
      %p30 = scmp.eq.s32.totalorder %s11, 0
      %p31 = por %p29, %p30
      %p32 = scmp.ne.s32.totalorder %s21, %s24
      %p33 = scmp.eq.s32.totalorder %s16, 1
      %p34 = por %p32, %p33
      %p35 = scmp.ne.s32.totalorder %s24, %s25
      %p36 = scmp.eq.s32.totalorder %s16, 0
      %p37 = por %p35, %p36
      %p38 = scmp.ne.s32.totalorder %s24, %s25
      %p39 = scmp.eq.s32.totalorder %s17, 1
      %p40 = por %p38, %p39
      %p42 = scmp.ne.s32.totalorder %s25, %s41
      %p43 = scmp.eq.s32.totalorder %s17, 0
      %p44 = por %p42, %p43
      %s45 = ssub.s32 %s11, %s18
      %p46 = scmp.eq.s32.totalorder %s45, 0
      %s48 = sadd.s32 %s47, 1
      %s49 = scalar_select %p46, %s47, %s48
      %p52 = pneg %p46
      %p53 = scmp.eq.s32.totalorder %s11, 1
      %p54 = por %p52, %p53
      %p55 = scmp.ne.s32.totalorder %s47, %s50
      %p56 = scmp.eq.s32.totalorder %s11, 0
      %p57 = por %p55, %p56
      %p58 = scmp.ne.s32.totalorder %s47, %s50
      %p59 = scmp.eq.s32.totalorder %s16, 1
      %p60 = por %p58, %p59
      %p61 = scmp.ne.s32.totalorder %s50, %s51
      %p62 = scmp.eq.s32.totalorder %s16, 0
      %p63 = por %p61, %p62
      %p64 = scmp.ne.s32.totalorder %s50, %s51
      %p65 = scmp.eq.s32.totalorder %s17, 1
      %p66 = por %p64, %p65
      %p68 = scmp.ne.s32.totalorder %s51, %s67
      %p69 = scmp.eq.s32.totalorder %s17, 0
      %p70 = por %p68, %p69
      %s72 = sadd.s32 %s71, 1
      %p75 = scmp.eq.s32.totalorder %s11, 1
      %p76 = scmp.ne.s32.totalorder %s71, %s73
      %p77 = scmp.eq.s32.totalorder %s11, 0
      %p78 = por %p76, %p77
      %p79 = scmp.ne.s32.totalorder %s71, %s73
      %p80 = scmp.eq.s32.totalorder %s16, 1
      %p81 = por %p79, %p80
      %p82 = scmp.ne.s32.totalorder %s73, %s74
      %p83 = scmp.eq.s32.totalorder %s16, 0
      %p84 = por %p82, %p83
      %p85 = scmp.ne.s32.totalorder %s73, %s74
      %p86 = scmp.eq.s32.totalorder %s17, 1
      %p87 = por %p85, %p86
      %p89 = scmp.ne.s32.totalorder %s74, %s88
      %p90 = scmp.eq.s32.totalorder %s17, 0
      %p91 = por %p89, %p90
      %s93 = sadd.s32 %s92, 1
      %p96 = scmp.eq.s32.totalorder %s11, 1
      %p97 = scmp.ne.s32.totalorder %s92, %s94
      %p98 = scmp.eq.s32.totalorder %s11, 0
      %p99 = por %p97, %p98
      %p100 = scmp.ne.s32.totalorder %s92, %s94
      %p101 = scmp.eq.s32.totalorder %s16, 1
      %p102 = por %p100, %p101
      %p103 = scmp.ne.s32.totalorder %s94, %s95
      %p104 = scmp.eq.s32.totalorder %s16, 0
      %p105 = por %p103, %p104
      %p106 = scmp.ne.s32.totalorder %s94, %s95
      %p107 = scmp.eq.s32.totalorder %s17, 1
      %p108 = por %p106, %p107
      %p110 = scmp.ne.s32.totalorder %s95, %s109
      %p111 = scmp.eq.s32.totalorder %s17, 0
      %p112 = por %p110, %p111
      %s114 = sadd.s32 %s113, 1
      %p117 = scmp.eq.s32.totalorder %s11, 1
      %p118 = scmp.ne.s32.totalorder %s113, %s115
      %p119 = scmp.eq.s32.totalorder %s11, 0
      %p120 = por %p118, %p119
      %p121 = scmp.ne.s32.totalorder %s113, %s115
      %p122 = scmp.eq.s32.totalorder %s16, 1
      %p123 = por %p121, %p122
      %p124 = scmp.ne.s32.totalorder %s115, %s116
      %p125 = scmp.eq.s32.totalorder %s16, 0
      %p126 = por %p124, %p125
      %p127 = scmp.ne.s32.totalorder %s115, %s116
      %p128 = scmp.eq.s32.totalorder %s17, 1
      %p129 = por %p127, %p128
      %p131 = scmp.ne.s32.totalorder %s116, %s130
      %p132 = scmp.eq.s32.totalorder %s17, 0
      %p133 = por %p131, %p132
      %s134 = ssub.s32 %s11, %s18
      %p135 = scmp.eq.s32.totalorder %s134, 0
      %s137 = sadd.s32 %s136, 1
      %s138 = scalar_select %p135, %s136, %s137
      %p141 = pneg %p135
      %p142 = scmp.eq.s32.totalorder %s11, 1
      %p143 = por %p141, %p142
      %p144 = scmp.ne.s32.totalorder %s136, %s139
      %p145 = scmp.eq.s32.totalorder %s11, 0
      %p146 = por %p144, %p145
      %p147 = scmp.ne.s32.totalorder %s136, %s139
      %p148 = scmp.eq.s32.totalorder %s16, 1
      %p149 = por %p147, %p148
      %p150 = scmp.ne.s32.totalorder %s139, %s140
      %p151 = scmp.eq.s32.totalorder %s16, 0
      %p152 = por %p150, %p151
      %p153 = scmp.ne.s32.totalorder %s139, %s140
      %p154 = scmp.eq.s32.totalorder %s17, 1
      %p155 = por %p153, %p154
      %p157 = scmp.ne.s32.totalorder %s140, %s156
      %p158 = scmp.eq.s32.totalorder %s17, 0
      %p159 = por %p157, %p158
      %p160 = scmp.le.s32.totalorder 1, %s11
      %p161 = scmp.lt.s32.totalorder %s11, 3
      %p162 = pnand %p160, %p161
      %p163 = pneg %p162
      // Predicated region
      $region9: #{tpu_custom_call.1} parent=5 // pred_check
        _
      $region10: #{tpu_custom_call.1} parent=5 // pred_check_branch
        %165 = sbr.rel (%p162) target = $region12
      $region11: #{tpu_custom_call.1} parent=5 // pred_region
        %s166 = ssub.s32 %s11, 1
        // Predicated region
        $region13: #{tpu_custom_call.1} parent=11 // pred_check
          %p167 = pneg %p84
        $region14: #{tpu_custom_call.1} parent=11 // pred_check_branch
          %169 = sbr.rel (%p167) target = $region16
        $region15: #{tpu_custom_call.1} parent=11 // pred_region
          _
        $region16: #{tpu_custom_call.1} parent=11 // pred_fallthru
          _
        // Predicated region
        $region17: #{tpu_custom_call.1} parent=11 // pred_check
          %p170 = pneg %p105
        $region18: #{tpu_custom_call.1} parent=11 // pred_check_branch
          %172 = sbr.rel (%p170) target = $region20
        $region19: #{tpu_custom_call.1} parent=11 // pred_region
          _
        $region20: #{tpu_custom_call.1} parent=11 // pred_fallthru
          _
        // Predicated region
        $region21: #{tpu_custom_call.1} parent=11 // pred_check
          %p173 = pneg %p126
        $region22: #{tpu_custom_call.1} parent=11 // pred_check_branch
          %175 = sbr.rel (%p173) target = $region24
        $region23: #{tpu_custom_call.1} parent=11 // pred_region
          _
        $region24: #{tpu_custom_call.1} parent=11 // pred_fallthru
          _
      $region12: #{tpu_custom_call.1} parent=5 // pred_fallthru
        _
      %p176 = scmp.lt.s32.totalorder %s11, 2
      // Predicated region
      $region25: #{tpu_custom_call.1} parent=5 // pred_check
        %p177 = pneg %p176
      $region26: #{tpu_custom_call.1} parent=5 // pred_check_branch
        %179 = sbr.rel (%p177) target = $region28
      $region27: #{tpu_custom_call.1} parent=5 // pred_region
        // Predicated region
        $region29: #{tpu_custom_call.1} parent=27 // pred_check
          %p180 = pneg %p31
        $region30: #{tpu_custom_call.1} parent=27 // pred_check_branch
          %182 = sbr.rel (%p180) target = $region32
        $region31: #{tpu_custom_call.1} parent=27 // pred_region
          %s183 = smul.u32 13, %s11
          %s184 = ssub.s32 25, %s183
          %p185 = scmp.lt.s32.totalorder %s184, 13
          %s186 = scalar_select %p185, %s184, 13
          %s187 = smul.u32 8, %s186
          %p188 = scmp.lt.s32.totalorder %s183, 24
          %s189 = scalar_select %p188, %s183, 24
          %s190 = smul.addr %s189, 8
          %s191 = scalar_lea.vmem %s0, %s190
          %s192 = smul.u32 13, %s11
          %s193 = ssub.s32 25, %s192
          %p194 = scmp.lt.s32.totalorder %s193, 13
          %s195 = scalar_select %p194, %s193, 13
          %s196 = smul.u32 8, %s195
        $region32: #{tpu_custom_call.1} parent=27 // pred_fallthru
          _
        // Predicated region
        $region33: #{tpu_custom_call.1} parent=27 // pred_check
          %p197 = pneg %p57
        $region34: #{tpu_custom_call.1} parent=27 // pred_check_branch
          %199 = sbr.rel (%p197) target = $region36
        $region35: #{tpu_custom_call.1} parent=27 // pred_region
          %s200 = smul.u32 104, %s11
          %s201 = ssub.s32 200, %s200
          %p202 = scmp.lt.s32.totalorder %s201, 104
          %s203 = scalar_select %p202, %s201, 104
          %p204 = scmp.lt.s32.totalorder %s200, 199
          %s205 = scalar_select %p204, %s200, 199
          %s206 = scalar_lea.vmem %s1, %s205
          %s207 = smul.u32 104, %s11
          %s208 = ssub.s32 200, %s207
          %p209 = scmp.lt.s32.totalorder %s208, 104
          %s210 = scalar_select %p209, %s208, 104
        $region36: #{tpu_custom_call.1} parent=27 // pred_fallthru
          _
      $region28: #{tpu_custom_call.1} parent=5 // pred_fallthru
        _
      %p211 = scmp.le.s32.totalorder 1, %s11
      %p212 = scmp.lt.s32.totalorder %s11, 3
      %p213 = pnand %p211, %p212
      %p214 = pneg %p213
      // Predicated region
      $region37: #{tpu_custom_call.1} parent=5 // pred_check
        _
      $region38: #{tpu_custom_call.1} parent=5 // pred_check_branch
        %216 = sbr.rel (%p213) target = $region40
      $region39: #{tpu_custom_call.1} parent=5 // pred_region
        %s217 = ssub.s32 %s11, 1
        %s218 = smul.u32 13, %s16
        %s219 = ssub.s32 25, %s218
        %p220 = scmp.lt.s32.totalorder %s219, 13
        %s221 = scalar_select %p220, %s219, 13
        %s222 = smul.u32 8, %s221
        %p223 = scmp.lt.s32.totalorder %s218, 24
        %s224 = scalar_select %p223, %s218, 24
        %s225 = smul.addr %s224, 8
        %s226 = scalar_lea.vmem %s0, %s225
        %p227 = pneg %p37
        %p228 = pneg %p34
        %s229 = smul.u32 104, %s16
        %s230 = ssub.s32 200, %s229
        %p231 = scmp.lt.s32.totalorder %s230, 104
        %s232 = scalar_select %p231, %s230, 104
        %p233 = scmp.lt.s32.totalorder %s229, 199
        %s234 = scalar_select %p233, %s229, 199
        %s235 = scalar_lea.vmem %s1, %s234
        %p236 = pneg %p63
        %p237 = pneg %p60
        %p238 = pneg %p84
        %p239 = pneg %p81
        %p240 = pneg %p105
        %p241 = pneg %p102
        %p242 = pneg %p126
        %p243 = pneg %p123
        %p244 = pneg %p152
        %p245 = pneg %p149
        %s246 = sand.u32 %s139, 1
        %s247 = sand.u32 %s139, 1
        %s248 = smul.addr %s247, 104
        %s249 = scalar_lea.vmem [#allocation2], %s248
        %s250 = smul.u32 13, %s16
        %s251 = ssub.s32 25, %s250
        %p252 = scmp.lt.s32.totalorder %s251, 13
        %s253 = scalar_select %p252, %s251, 13
        %s254 = smul.u32 8, %s253
        %p255 = scmp.lt.s32.totalorder %s250, 24
        %s256 = scalar_select %p255, %s250, 24
        %s257 = smul.addr %s256, 8
        %s258 = scalar_lea.vmem %s0, %s257
        %s259 = smul.u32 13, %s16
        %s260 = ssub.s32 25, %s259
        %p261 = scmp.lt.s32.totalorder %s260, 13
        %s262 = scalar_select %p261, %s260, 13
        %s263 = smul.u32 8, %s262
        %s264 = smul.u32 104, %s16
        %s265 = ssub.s32 200, %s264
        %p266 = scmp.lt.s32.totalorder %s265, 104
        %s267 = scalar_select %p266, %s265, 104
        %p268 = scmp.lt.s32.totalorder %s264, 199
        %s269 = scalar_select %p268, %s264, 199
        %s270 = scalar_lea.vmem %s1, %s269
        %s271 = smul.u32 104, %s16
        %s272 = ssub.s32 200, %s271
        %p273 = scmp.lt.s32.totalorder %s272, 104
        %s274 = scalar_select %p273, %s272, 104
        %s275 = smul.u32 13, %s16
        %s276 = ssub.s32 25, %s275
        %p277 = scmp.lt.s32.totalorder %s276, 13
        %s278 = scalar_select %p277, %s276, 13
        %s279 = smul.u32 8, %s278
        %v280 = vld [vmem:[%s258] sm:$0xff]
        %v281 = vld [vmem:[%s258 + $0x8] sm:$0xff]
        %v282 = vld [vmem:[%s258 + $0x10] sm:$0xff]
        %v283 = vld [vmem:[%s258 + $0x18] sm:$0xff]
        %v284 = vld [vmem:[%s258 + $0x20] sm:$0xff]
        %v285 = vld [vmem:[%s258 + $0x28] sm:$0xff]
        %v286 = vld [vmem:[%s258 + $0x30] sm:$0xff]
        %v287 = vld [vmem:[%s258 + $0x38] sm:$0xff]
        %v288 = vld [vmem:[%s258 + $0x40] sm:$0xff]
        %v289 = vld [vmem:[%s258 + $0x48] sm:$0xff]
        %v290 = vld [vmem:[%s258 + $0x50] sm:$0xff]
        %v291 = vld [vmem:[%s258 + $0x58] sm:$0xff]
        %v292 = vld [vmem:[%s258 + $0x60] sm:$0xff]
        %v293 = vld [vmem:[%s2] sm:$0xff]
        %v294 = vld [vmem:[%s2 + $0x8] sm:$0xff]
        %v295 = vld [vmem:[%s2 + $0x10] sm:$0xff]
        %v296 = vld [vmem:[%s2 + $0x18] sm:$0xff]
        %v297 = vld [vmem:[%s270] sm:$0x1]
        %v298 = vld [vmem:[%s270 + $0x1] sm:$0x1]
        %v299 = vld [vmem:[%s270 + $0x2] sm:$0x1]
        %v300 = vld [vmem:[%s270 + $0x3] sm:$0x1]
        %v301 = vld [vmem:[%s270 + $0x4] sm:$0x1]
        %v302 = vld [vmem:[%s270 + $0x5] sm:$0x1]
        %v303 = vld [vmem:[%s270 + $0x6] sm:$0x1]
        %v304 = vld [vmem:[%s270 + $0x7] sm:$0x1]
        %v305 = vld [vmem:[%s270 + $0x8] sm:$0x1]
        %v306 = vld [vmem:[%s270 + $0x9] sm:$0x1]
        %v307 = vld [vmem:[%s270 + $0xa] sm:$0x1]
        %v308 = vld [vmem:[%s270 + $0xb] sm:$0x1]
        %v309 = vld [vmem:[%s270 + $0xc] sm:$0x1]
        %v310 = vld [vmem:[%s270 + $0xd] sm:$0x1]
        %v311 = vld [vmem:[%s270 + $0xe] sm:$0x1]
        %v312 = vld [vmem:[%s270 + $0xf] sm:$0x1]
        %v313 = vld [vmem:[%s270 + $0x10] sm:$0x1]
        %v314 = vld [vmem:[%s270 + $0x11] sm:$0x1]
        %v315 = vld [vmem:[%s270 + $0x12] sm:$0x1]
        %v316 = vld [vmem:[%s270 + $0x13] sm:$0x1]
        %v317 = vld [vmem:[%s270 + $0x14] sm:$0x1]
        %v318 = vld [vmem:[%s270 + $0x15] sm:$0x1]
        %v319 = vld [vmem:[%s270 + $0x16] sm:$0x1]
        %v320 = vld [vmem:[%s270 + $0x17] sm:$0x1]
        %v321 = vld [vmem:[%s270 + $0x18] sm:$0x1]
        %v322 = vld [vmem:[%s270 + $0x19] sm:$0x1]
        %v323 = vld [vmem:[%s270 + $0x1a] sm:$0x1]
        %v324 = vld [vmem:[%s270 + $0x1b] sm:$0x1]
        %v325 = vld [vmem:[%s270 + $0x1c] sm:$0x1]
        %v326 = vld [vmem:[%s270 + $0x1d] sm:$0x1]
        %v327 = vld [vmem:[%s270 + $0x1e] sm:$0x1]
        %v328 = vld [vmem:[%s270 + $0x1f] sm:$0x1]
        %v329 = vld [vmem:[%s270 + $0x20] sm:$0x1]
        %v330 = vld [vmem:[%s270 + $0x21] sm:$0x1]
        %v331 = vld [vmem:[%s270 + $0x22] sm:$0x1]
        %v332 = vld [vmem:[%s270 + $0x23] sm:$0x1]
        %v333 = vld [vmem:[%s270 + $0x24] sm:$0x1]
        %v334 = vld [vmem:[%s270 + $0x25] sm:$0x1]
        %v335 = vld [vmem:[%s270 + $0x26] sm:$0x1]
        %v336 = vld [vmem:[%s270 + $0x27] sm:$0x1]
        %v337 = vld [vmem:[%s270 + $0x28] sm:$0x1]
        %v338 = vld [vmem:[%s270 + $0x29] sm:$0x1]
        %v339 = vld [vmem:[%s270 + $0x2a] sm:$0x1]
        %v340 = vld [vmem:[%s270 + $0x2b] sm:$0x1]
        %v341 = vld [vmem:[%s270 + $0x2c] sm:$0x1]
        %v342 = vld [vmem:[%s270 + $0x2d] sm:$0x1]
        %v343 = vld [vmem:[%s270 + $0x2e] sm:$0x1]
        %v344 = vld [vmem:[%s270 + $0x2f] sm:$0x1]
        %v345 = vld [vmem:[%s270 + $0x30] sm:$0x1]
        %v346 = vld [vmem:[%s270 + $0x31] sm:$0x1]
        %v347 = vld [vmem:[%s270 + $0x32] sm:$0x1]
        %v348 = vld [vmem:[%s270 + $0x33] sm:$0x1]
        %v349 = vld [vmem:[%s270 + $0x34] sm:$0x1]
        %v350 = vld [vmem:[%s270 + $0x35] sm:$0x1]
        %v351 = vld [vmem:[%s270 + $0x36] sm:$0x1]
        %v352 = vld [vmem:[%s270 + $0x37] sm:$0x1]
        %v353 = vld [vmem:[%s270 + $0x38] sm:$0x1]
        %v354 = vld [vmem:[%s270 + $0x39] sm:$0x1]
        %v355 = vld [vmem:[%s270 + $0x3a] sm:$0x1]
        %v356 = vld [vmem:[%s270 + $0x3b] sm:$0x1]
        %v357 = vld [vmem:[%s270 + $0x3c] sm:$0x1]
        %v358 = vld [vmem:[%s270 + $0x3d] sm:$0x1]
        %v359 = vld [vmem:[%s270 + $0x3e] sm:$0x1]
        %v360 = vld [vmem:[%s270 + $0x3f] sm:$0x1]
        %v361 = vld [vmem:[%s270 + $0x40] sm:$0x1]
        %v362 = vld [vmem:[%s270 + $0x41] sm:$0x1]
        %v363 = vld [vmem:[%s270 + $0x42] sm:$0x1]
        %v364 = vld [vmem:[%s270 + $0x43] sm:$0x1]
        %v365 = vld [vmem:[%s270 + $0x44] sm:$0x1]
        %v366 = vld [vmem:[%s270 + $0x45] sm:$0x1]
        %v367 = vld [vmem:[%s270 + $0x46] sm:$0x1]
        %v368 = vld [vmem:[%s270 + $0x47] sm:$0x1]
        %v369 = vld [vmem:[%s270 + $0x48] sm:$0x1]
        %v370 = vld [vmem:[%s270 + $0x49] sm:$0x1]
        %v371 = vld [vmem:[%s270 + $0x4a] sm:$0x1]
        %v372 = vld [vmem:[%s270 + $0x4b] sm:$0x1]
        %v373 = vld [vmem:[%s270 + $0x4c] sm:$0x1]
        %v374 = vld [vmem:[%s270 + $0x4d] sm:$0x1]
        %v375 = vld [vmem:[%s270 + $0x4e] sm:$0x1]
        %v376 = vld [vmem:[%s270 + $0x4f] sm:$0x1]
        %v377 = vld [vmem:[%s270 + $0x50] sm:$0x1]
        %v378 = vld [vmem:[%s270 + $0x51] sm:$0x1]
        %v379 = vld [vmem:[%s270 + $0x52] sm:$0x1]
        %v380 = vld [vmem:[%s270 + $0x53] sm:$0x1]
        %v381 = vld [vmem:[%s270 + $0x54] sm:$0x1]
        %v382 = vld [vmem:[%s270 + $0x55] sm:$0x1]
        %v383 = vld [vmem:[%s270 + $0x56] sm:$0x1]
        %v384 = vld [vmem:[%s270 + $0x57] sm:$0x1]
        %v385 = vld [vmem:[%s270 + $0x58] sm:$0x1]
        %v386 = vld [vmem:[%s270 + $0x59] sm:$0x1]
        %v387 = vld [vmem:[%s270 + $0x5a] sm:$0x1]
        %v388 = vld [vmem:[%s270 + $0x5b] sm:$0x1]
        %v389 = vld [vmem:[%s270 + $0x5c] sm:$0x1]
        %v390 = vld [vmem:[%s270 + $0x5d] sm:$0x1]
        %v391 = vld [vmem:[%s270 + $0x5e] sm:$0x1]
        %v392 = vld [vmem:[%s270 + $0x5f] sm:$0x1]
        %v393 = vld [vmem:[%s270 + $0x60] sm:$0x1]
        %v394 = vld [vmem:[%s270 + $0x61] sm:$0x1]
        %v395 = vld [vmem:[%s270 + $0x62] sm:$0x1]
        %v396 = vld [vmem:[%s270 + $0x63] sm:$0x1]
        %v397 = vld [vmem:[%s270 + $0x64] sm:$0x1]
        %v398 = vld [vmem:[%s270 + $0x65] sm:$0x1]
        %v399 = vld [vmem:[%s270 + $0x66] sm:$0x1]
        %v400 = vld [vmem:[%s270 + $0x67] sm:$0x1]
        %v401 = vld [vmem:[%s3] sm:$0xff]
        %v402 = vld [vmem:[%s3 + $0x8] sm:$0xff]
        %v403 = vld [vmem:[%s3 + $0x10] sm:$0xff]
        %v404 = vld [vmem:[%s3 + $0x18] sm:$0xff]
        %509 = vst [vmem:[#allocation1] ss:$9 sm:$0xff] %v297
        %s510 = scalar_lea.vmem [#allocation1], 1
        %511 = vst [vmem:[%s510] ss:$9 sm:$0xff] %v298
        %s512 = scalar_lea.vmem [#allocation1], 2
        %513 = vst [vmem:[%s512] ss:$9 sm:$0xff] %v299
        %s514 = scalar_lea.vmem [#allocation1], 3
        %515 = vst [vmem:[%s514] ss:$9 sm:$0xff] %v300
        %s516 = scalar_lea.vmem [#allocation1], 4
        %517 = vst [vmem:[%s516] ss:$9 sm:$0xff] %v301
        %s518 = scalar_lea.vmem [#allocation1], 5
        %519 = vst [vmem:[%s518] ss:$9 sm:$0xff] %v302
        %s520 = scalar_lea.vmem [#allocation1], 6
        %521 = vst [vmem:[%s520] ss:$9 sm:$0xff] %v303
        %s522 = scalar_lea.vmem [#allocation1], 7
        %523 = vst [vmem:[%s522] ss:$9 sm:$0xff] %v304
        %v524 = vld [vmem:[#allocation1] sm:$0xff]
        %525 = vst [vmem:[#allocation1] ss:$9 sm:$0xff] %v305
        %526 = vst [vmem:[%s510] ss:$9 sm:$0xff] %v306
        %527 = vst [vmem:[%s512] ss:$9 sm:$0xff] %v307
        %528 = vst [vmem:[%s514] ss:$9 sm:$0xff] %v308
        %529 = vst [vmem:[%s516] ss:$9 sm:$0xff] %v309
        %530 = vst [vmem:[%s518] ss:$9 sm:$0xff] %v310
        %531 = vst [vmem:[%s520] ss:$9 sm:$0xff] %v311
        %532 = vst [vmem:[%s522] ss:$9 sm:$0xff] %v312
        %v533 = vld [vmem:[#allocation1] sm:$0xff]
        %534 = vst [vmem:[#allocation1] ss:$9 sm:$0xff] %v313
        %535 = vst [vmem:[%s510] ss:$9 sm:$0xff] %v314
        %536 = vst [vmem:[%s512] ss:$9 sm:$0xff] %v315
        %537 = vst [vmem:[%s514] ss:$9 sm:$0xff] %v316
        %538 = vst [vmem:[%s516] ss:$9 sm:$0xff] %v317
        %539 = vst [vmem:[%s518] ss:$9 sm:$0xff] %v318
        %540 = vst [vmem:[%s520] ss:$9 sm:$0xff] %v319
        %541 = vst [vmem:[%s522] ss:$9 sm:$0xff] %v320
        %v542 = vld [vmem:[#allocation1] sm:$0xff]
        %543 = vst [vmem:[#allocation1] ss:$9 sm:$0xff] %v321
        %544 = vst [vmem:[%s510] ss:$9 sm:$0xff] %v322
        %545 = vst [vmem:[%s512] ss:$9 sm:$0xff] %v323
        %546 = vst [vmem:[%s514] ss:$9 sm:$0xff] %v324
        %547 = vst [vmem:[%s516] ss:$9 sm:$0xff] %v325
        %548 = vst [vmem:[%s518] ss:$9 sm:$0xff] %v326
        %549 = vst [vmem:[%s520] ss:$9 sm:$0xff] %v327
        %550 = vst [vmem:[%s522] ss:$9 sm:$0xff] %v328
        %v551 = vld [vmem:[#allocation1] sm:$0xff]
        %552 = vst [vmem:[#allocation1] ss:$9 sm:$0xff] %v329
        %553 = vst [vmem:[%s510] ss:$9 sm:$0xff] %v330
        %554 = vst [vmem:[%s512] ss:$9 sm:$0xff] %v331
        %555 = vst [vmem:[%s514] ss:$9 sm:$0xff] %v332
        %556 = vst [vmem:[%s516] ss:$9 sm:$0xff] %v333
        %557 = vst [vmem:[%s518] ss:$9 sm:$0xff] %v334
        %558 = vst [vmem:[%s520] ss:$9 sm:$0xff] %v335
        %559 = vst [vmem:[%s522] ss:$9 sm:$0xff] %v336
        %v560 = vld [vmem:[#allocation1] sm:$0xff]
        %561 = vst [vmem:[#allocation1] ss:$9 sm:$0xff] %v337
        %562 = vst [vmem:[%s510] ss:$9 sm:$0xff] %v338
        %563 = vst [vmem:[%s512] ss:$9 sm:$0xff] %v339
        %564 = vst [vmem:[%s514] ss:$9 sm:$0xff] %v340
        %565 = vst [vmem:[%s516] ss:$9 sm:$0xff] %v341
        %566 = vst [vmem:[%s518] ss:$9 sm:$0xff] %v342
        %567 = vst [vmem:[%s520] ss:$9 sm:$0xff] %v343
        %568 = vst [vmem:[%s522] ss:$9 sm:$0xff] %v344
        %v569 = vld [vmem:[#allocation1] sm:$0xff]
        %570 = vst [vmem:[#allocation1] ss:$9 sm:$0xff] %v345
        %571 = vst [vmem:[%s510] ss:$9 sm:$0xff] %v346
        %572 = vst [vmem:[%s512] ss:$9 sm:$0xff] %v347
        %573 = vst [vmem:[%s514] ss:$9 sm:$0xff] %v348
        %574 = vst [vmem:[%s516] ss:$9 sm:$0xff] %v349
        %575 = vst [vmem:[%s518] ss:$9 sm:$0xff] %v350
        %576 = vst [vmem:[%s520] ss:$9 sm:$0xff] %v351
        %577 = vst [vmem:[%s522] ss:$9 sm:$0xff] %v352
        %v578 = vld [vmem:[#allocation1] sm:$0xff]
        %579 = vst [vmem:[#allocation1] ss:$9 sm:$0xff] %v353
        %580 = vst [vmem:[%s510] ss:$9 sm:$0xff] %v354
        %581 = vst [vmem:[%s512] ss:$9 sm:$0xff] %v355
        %582 = vst [vmem:[%s514] ss:$9 sm:$0xff] %v356
        %583 = vst [vmem:[%s516] ss:$9 sm:$0xff] %v357
        %584 = vst [vmem:[%s518] ss:$9 sm:$0xff] %v358
        %585 = vst [vmem:[%s520] ss:$9 sm:$0xff] %v359
        %586 = vst [vmem:[%s522] ss:$9 sm:$0xff] %v360
        %v587 = vld [vmem:[#allocation1] sm:$0xff]
        %588 = vst [vmem:[#allocation1] ss:$9 sm:$0xff] %v361
        %589 = vst [vmem:[%s510] ss:$9 sm:$0xff] %v362
        %590 = vst [vmem:[%s512] ss:$9 sm:$0xff] %v363
        %591 = vst [vmem:[%s514] ss:$9 sm:$0xff] %v364
        %592 = vst [vmem:[%s516] ss:$9 sm:$0xff] %v365
        %593 = vst [vmem:[%s518] ss:$9 sm:$0xff] %v366
        %594 = vst [vmem:[%s520] ss:$9 sm:$0xff] %v367
        %595 = vst [vmem:[%s522] ss:$9 sm:$0xff] %v368
        %v596 = vld [vmem:[#allocation1] sm:$0xff]
        %597 = vst [vmem:[#allocation1] ss:$9 sm:$0xff] %v369
        %598 = vst [vmem:[%s510] ss:$9 sm:$0xff] %v370
        %599 = vst [vmem:[%s512] ss:$9 sm:$0xff] %v371
        %600 = vst [vmem:[%s514] ss:$9 sm:$0xff] %v372
        %601 = vst [vmem:[%s516] ss:$9 sm:$0xff] %v373
        %602 = vst [vmem:[%s518] ss:$9 sm:$0xff] %v374
        %603 = vst [vmem:[%s520] ss:$9 sm:$0xff] %v375
        %604 = vst [vmem:[%s522] ss:$9 sm:$0xff] %v376
        %v605 = vld [vmem:[#allocation1] sm:$0xff]
        %606 = vst [vmem:[#allocation1] ss:$9 sm:$0xff] %v377
        %607 = vst [vmem:[%s510] ss:$9 sm:$0xff] %v378
        %608 = vst [vmem:[%s512] ss:$9 sm:$0xff] %v379
        %609 = vst [vmem:[%s514] ss:$9 sm:$0xff] %v380
        %610 = vst [vmem:[%s516] ss:$9 sm:$0xff] %v381
        %611 = vst [vmem:[%s518] ss:$9 sm:$0xff] %v382
        %612 = vst [vmem:[%s520] ss:$9 sm:$0xff] %v383
        %613 = vst [vmem:[%s522] ss:$9 sm:$0xff] %v384
        %v614 = vld [vmem:[#allocation1] sm:$0xff]
        %615 = vst [vmem:[#allocation1] ss:$9 sm:$0xff] %v385
        %616 = vst [vmem:[%s510] ss:$9 sm:$0xff] %v386
        %617 = vst [vmem:[%s512] ss:$9 sm:$0xff] %v387
        %618 = vst [vmem:[%s514] ss:$9 sm:$0xff] %v388
        %619 = vst [vmem:[%s516] ss:$9 sm:$0xff] %v389
        %620 = vst [vmem:[%s518] ss:$9 sm:$0xff] %v390
        %621 = vst [vmem:[%s520] ss:$9 sm:$0xff] %v391
        %622 = vst [vmem:[%s522] ss:$9 sm:$0xff] %v392
        %v623 = vld [vmem:[#allocation1] sm:$0xff]
        %624 = vst [vmem:[#allocation1] ss:$9 sm:$0xff] %v393
        %625 = vst [vmem:[%s510] ss:$9 sm:$0xff] %v394
        %626 = vst [vmem:[%s512] ss:$9 sm:$0xff] %v395
        %627 = vst [vmem:[%s514] ss:$9 sm:$0xff] %v396
        %628 = vst [vmem:[%s516] ss:$9 sm:$0xff] %v397
        %629 = vst [vmem:[%s518] ss:$9 sm:$0xff] %v398
        %630 = vst [vmem:[%s520] ss:$9 sm:$0xff] %v399
        %631 = vst [vmem:[%s522] ss:$9 sm:$0xff] %v400
        %v632 = vld [vmem:[#allocation1] sm:$0xff]
        %vm633 = vcmask 261120
        %v634 = vsel %vm633, %v524, 0
        %v636 = vsel %vm633, %v533, 0
        %v638 = vsel %vm633, %v542, 0
        %v640 = vsel %vm633, %v551, 0
        %v642 = vsel %vm633, %v560, 0
        %v644 = vsel %vm633, %v569, 0
        %v646 = vsel %vm633, %v578, 0
        %v648 = vsel %vm633, %v587, 0
        %v650 = vsel %vm633, %v596, 0
        %v652 = vsel %vm633, %v605, 0
        %v654 = vsel %vm633, %v614, 0
        %v656 = vsel %vm633, %v623, 0
        %v658 = vsel %vm633, %v632, 0
        %660 = vmatpush.msra.mxu0 0.0
        %661 = vmatpush.msra.mxu0 0.0
        %662 = vmatpush.msra.mxu0 0.0
        %663 = vmatpush.msra.mxu0 0.0
        %664 = vmatpush.msra.mxu0 0.0
        %665 = vmatpush.msra.mxu0 0.0
        %666 = vmatpush.msra.mxu0 0.0
        %667 = vmatpush.msra.mxu0 0.0
        %668 = vmatpush.msra.mxu0 0.0
        %669 = vmatpush.msra.mxu0 0.0
        %670 = vmatpush.msra.mxu0 0.0
        %671 = vmatpush.msra.mxu0 0.0
        %672 = vmatpush.msra.mxu0 %v404
        %673 = vmatpush.msra.mxu0 %v403
        %674 = vmatpush.msra.mxu0 %v402
        %675 = vmatpush.msra.mxu0 %v401
        %676 = vmatmul.f32.gmra.mxu0 %v634
        %v677 = vpop.f32.mrf.mxu0
        %v678 = vadd.f32 0.0, %v677
        %679 = vmatmul.f32.gmra.mxu0 %v636
        %v680 = vpop.f32.mrf.mxu0
        %v681 = vadd.f32 0.0, %v680
        %682 = vmatmul.f32.gmra.mxu0 %v638
        %v683 = vpop.f32.mrf.mxu0
        %v684 = vadd.f32 0.0, %v683
        %685 = vmatmul.f32.gmra.mxu0 %v640
        %v686 = vpop.f32.mrf.mxu0
        %v687 = vadd.f32 0.0, %v686
        %688 = vmatmul.f32.gmra.mxu0 %v642
        %v689 = vpop.f32.mrf.mxu0
        %v690 = vadd.f32 0.0, %v689
        %691 = vmatmul.f32.gmra.mxu0 %v644
        %v692 = vpop.f32.mrf.mxu0
        %v693 = vadd.f32 0.0, %v692
        %694 = vmatmul.f32.gmra.mxu0 %v646
        %v695 = vpop.f32.mrf.mxu0
        %v696 = vadd.f32 0.0, %v695
        %697 = vmatmul.f32.gmra.mxu0 %v648
        %v698 = vpop.f32.mrf.mxu0
        %v699 = vadd.f32 0.0, %v698
        %700 = vmatmul.f32.gmra.mxu0 %v650
        %v701 = vpop.f32.mrf.mxu0
        %v702 = vadd.f32 0.0, %v701
        %703 = vmatmul.f32.gmra.mxu0 %v652
        %v704 = vpop.f32.mrf.mxu0
        %v705 = vadd.f32 0.0, %v704
        %706 = vmatmul.f32.gmra.mxu0 %v654
        %v707 = vpop.f32.mrf.mxu0
        %v708 = vadd.f32 0.0, %v707
        %709 = vmatmul.f32.gmra.mxu0 %v656
        %v710 = vpop.f32.mrf.mxu0
        %v711 = vadd.f32 0.0, %v710
        %712 = vmatmul.f32.gmra.mxu0 %v658
        %v713 = vpop.f32.mrf.mxu0
        %v714 = vadd.f32 0.0, %v713
        %715 = vdwg.mxu0
        %v717 = vsel %vm633, %v280, 0
        %v720 = vsel %vm633, %v281, 0
        %v723 = vsel %vm633, %v282, 0
        %v726 = vsel %vm633, %v283, 0
        %v729 = vsel %vm633, %v284, 0
        %v732 = vsel %vm633, %v285, 0
        %v735 = vsel %vm633, %v286, 0
        %v738 = vsel %vm633, %v287, 0
        %v741 = vsel %vm633, %v288, 0
        %v744 = vsel %vm633, %v289, 0
        %v747 = vsel %vm633, %v290, 0
        %v750 = vsel %vm633, %v291, 0
        %v753 = vsel %vm633, %v292, 0
        %755 = vmatpush.msra.mxu0 0.0
        %756 = vmatpush.msra.mxu0 0.0
        %757 = vmatpush.msra.mxu0 0.0
        %758 = vmatpush.msra.mxu0 0.0
        %759 = vmatpush.msra.mxu0 0.0
        %760 = vmatpush.msra.mxu0 0.0
        %761 = vmatpush.msra.mxu0 0.0
        %762 = vmatpush.msra.mxu0 0.0
        %763 = vmatpush.msra.mxu0 0.0
        %764 = vmatpush.msra.mxu0 0.0
        %765 = vmatpush.msra.mxu0 0.0
        %766 = vmatpush.msra.mxu0 0.0
        %767 = vmatpush.msra.mxu0 %v296
        %768 = vmatpush.msra.mxu0 %v295
        %769 = vmatpush.msra.mxu0 %v294
        %770 = vmatpush.msra.mxu0 %v293
        %771 = vmatmul.f32.gmra.mxu0 %v717
        %v772 = vpop.f32.mrf.mxu0
        %v773 = vadd.f32 %v678, %v772
        %774 = vmatmul.f32.gmra.mxu0 %v720
        %v775 = vpop.f32.mrf.mxu0
        %v776 = vadd.f32 %v681, %v775
        %777 = vmatmul.f32.gmra.mxu0 %v723
        %v778 = vpop.f32.mrf.mxu0
        %v779 = vadd.f32 %v684, %v778
        %780 = vmatmul.f32.gmra.mxu0 %v726
        %v781 = vpop.f32.mrf.mxu0
        %v782 = vadd.f32 %v687, %v781
        %783 = vmatmul.f32.gmra.mxu0 %v729
        %v784 = vpop.f32.mrf.mxu0
        %v785 = vadd.f32 %v690, %v784
        %786 = vmatmul.f32.gmra.mxu0 %v732
        %v787 = vpop.f32.mrf.mxu0
        %v788 = vadd.f32 %v693, %v787
        %789 = vmatmul.f32.gmra.mxu0 %v735
        %v790 = vpop.f32.mrf.mxu0
        %v791 = vadd.f32 %v696, %v790
        %792 = vmatmul.f32.gmra.mxu0 %v738
        %v793 = vpop.f32.mrf.mxu0
        %v794 = vadd.f32 %v699, %v793
        %795 = vmatmul.f32.gmra.mxu0 %v741
        %v796 = vpop.f32.mrf.mxu0
        %v797 = vadd.f32 %v702, %v796
        %798 = vmatmul.f32.gmra.mxu0 %v744
        %v799 = vpop.f32.mrf.mxu0
        %v800 = vadd.f32 %v705, %v799
        %801 = vmatmul.f32.gmra.mxu0 %v747
        %v802 = vpop.f32.mrf.mxu0
        %v803 = vadd.f32 %v708, %v802
        %804 = vmatmul.f32.gmra.mxu0 %v750
        %v805 = vpop.f32.mrf.mxu0
        %v806 = vadd.f32 %v711, %v805
        %807 = vmatmul.f32.gmra.mxu0 %v753
        %v808 = vpop.f32.mrf.mxu0
        %v809 = vadd.f32 %v714, %v808
        %810 = vdwg.mxu0
        %v811 = vld [vmem:[%s4] sm:$0x1]
        %v813 = vperm.slane %v811, 0
        %v815 = vadd.f32 %v773, %v813
        %v816 = vadd.f32 %v776, %v813
        %v817 = vadd.f32 %v779, %v813
        %v818 = vadd.f32 %v782, %v813
        %v819 = vadd.f32 %v785, %v813
        %v820 = vadd.f32 %v788, %v813
        %v821 = vadd.f32 %v791, %v813
        %v822 = vadd.f32 %v794, %v813
        %v823 = vadd.f32 %v797, %v813
        %v824 = vadd.f32 %v800, %v813
        %v825 = vadd.f32 %v803, %v813
        %v826 = vadd.f32 %v806, %v813
        %v827 = vadd.f32 %v809, %v813
        %vm828 = vcmask 179200
        %829 = vst.msk [vmem:[%s249] sm:$0xff] %vm828, %v815
        %830 = vst.msk [vmem:[%s249 + $0x8] sm:$0xff] %vm828, %v816
        %831 = vst.msk [vmem:[%s249 + $0x10] sm:$0xff] %vm828, %v817
        %832 = vst.msk [vmem:[%s249 + $0x18] sm:$0xff] %vm828, %v818
        %833 = vst.msk [vmem:[%s249 + $0x20] sm:$0xff] %vm828, %v819
        %834 = vst.msk [vmem:[%s249 + $0x28] sm:$0xff] %vm828, %v820
        %835 = vst.msk [vmem:[%s249 + $0x30] sm:$0xff] %vm828, %v821
        %836 = vst.msk [vmem:[%s249 + $0x38] sm:$0xff] %vm828, %v822
        %837 = vst.msk [vmem:[%s249 + $0x40] sm:$0xff] %vm828, %v823
        %838 = vst.msk [vmem:[%s249 + $0x48] sm:$0xff] %vm828, %v824
        %839 = vst.msk [vmem:[%s249 + $0x50] sm:$0xff] %vm828, %v825
        %840 = vst.msk [vmem:[%s249 + $0x58] sm:$0xff] %vm828, %v826
        %841 = vst.msk [vmem:[%s249 + $0x60] sm:$0xff] %vm828, %v827
        %s842 = sand.u32 %s139, 1
        %s843 = sand.u32 %s139, 1
        %s844 = smul.addr %s843, 104
        %s845 = scalar_lea.vmem [#allocation2], %s844
        // Predicated region
        $region41: #{tpu_custom_call.1} parent=39 // pred_check
          %p846 = pneg %p149
        $region42: #{tpu_custom_call.1} parent=39 // pred_check_branch
          %848 = sbr.rel (%p846) target = $region44
        $region43: #{tpu_custom_call.1} parent=39 // pred_region
          %s849 = smul.u32 13, %s16
          %s850 = ssub.s32 25, %s849
          %p851 = scmp.lt.s32.totalorder %s850, 13
          %s852 = scalar_select %p851, %s850, 13
          %s853 = smul.u32 8, %s852
          %p854 = scmp.ne.s32.totalorder 0, %s853
          %s855 = smul.addr %s849, 8
          %s856 = scalar_lea.vmem %s5, %s855
          // Predicated region
          $region45: #{tpu_custom_call.1} parent=43 // pred_check
            %p857 = pneg %p854
          $region46: #{tpu_custom_call.1} parent=43 // pred_check_branch
            %859 = sbr.rel (%p857) target = $region48
          $region47: #{tpu_custom_call.1} parent=43 // pred_region
            // Predicated region
            $region49: #{tpu_custom_call.1} parent=47 // pred_check
              _
            $region50: #{tpu_custom_call.1} parent=47 // pred_check_branch
              %861 = sbr.rel (0) target = $region52
            $region51: #{tpu_custom_call.1} parent=47 // pred_region
              // Predicated region
              $region71: #{tpu_custom_call.1} parent=51 // pred_check
                _
              $region72: #{tpu_custom_call.1} parent=51 // pred_check_branch
                %936 = sbr.rel (0) target = $region74
              $region73: #{tpu_custom_call.1} parent=51 // pred_region
                %s937 = sdiv.u32.pop %s852, 13
                %s938 = srem.u32.pop %s852, 13
                // While loop
                $region75: #{tpu_custom_call.1} parent=73 // loop_pre_header
                  _
                $region76: #{tpu_custom_call.1} parent=73 // loop_header
                  %s940 = sphi 0, %s942
                  %p941 = scmp.ge.s32.totalorder %s940, %s937
                  %s945 = sphi 0, %s976
                  %s946 = sphi %s845, %s979
                  %s947 = sphi %s856, %s980
                $region77: #{tpu_custom_call.1} parent=73 // loop_header_branch
                  %944 = sbr.rel (%p941) target = $region81
                $region78: #{tpu_custom_call.1} parent=73 // loop_body
                  %v948 = vld [vmem:[%s946] sm:$0xff]
                  %949 = vst [vmem:[%s947] sm:$0xff] %v948
                  %v950 = vld [vmem:[%s946 + $0x8] sm:$0xff]
                  %951 = vst [vmem:[%s947 + $0x8] sm:$0xff] %v950
                  %v952 = vld [vmem:[%s946 + $0x10] sm:$0xff]
                  %953 = vst [vmem:[%s947 + $0x10] sm:$0xff] %v952
                  %v954 = vld [vmem:[%s946 + $0x18] sm:$0xff]
                  %955 = vst [vmem:[%s947 + $0x18] sm:$0xff] %v954
                  %v956 = vld [vmem:[%s946 + $0x20] sm:$0xff]
                  %957 = vst [vmem:[%s947 + $0x20] sm:$0xff] %v956
                  %v958 = vld [vmem:[%s946 + $0x28] sm:$0xff]
                  %959 = vst [vmem:[%s947 + $0x28] sm:$0xff] %v958
                  %v960 = vld [vmem:[%s946 + $0x30] sm:$0xff]
                  %961 = vst [vmem:[%s947 + $0x30] sm:$0xff] %v960
                  %v962 = vld [vmem:[%s946 + $0x38] sm:$0xff]
                  %963 = vst [vmem:[%s947 + $0x38] sm:$0xff] %v962
                  %v964 = vld [vmem:[%s946 + $0x40] sm:$0xff]
                  %965 = vst [vmem:[%s947 + $0x40] sm:$0xff] %v964
                  %v966 = vld [vmem:[%s946 + $0x48] sm:$0xff]
                  %967 = vst [vmem:[%s947 + $0x48] sm:$0xff] %v966
                  %v968 = vld [vmem:[%s946 + $0x50] sm:$0xff]
                  %969 = vst [vmem:[%s947 + $0x50] sm:$0xff] %v968
                  %v970 = vld [vmem:[%s946 + $0x58] sm:$0xff]
                  %971 = vst [vmem:[%s947 + $0x58] sm:$0xff] %v970
                  %v972 = vld [vmem:[%s946 + $0x60] sm:$0xff]
                  %973 = vst [vmem:[%s947 + $0x60] sm:$0xff] %v972
                  %s974 = sadd.s32 1, %s945
                  %p975 = scmp.ge.s32.totalorder %s974, %s937
                  %s976 = scalar_select %p975, 0, %s974
                  %s977 = smul.u32 %s976, 104
                  %s978 = smul.u32 %s976, 104
                  %s979 = scalar_lea.vmem %s845, %s977 [#allocation2]
                  %s980 = scalar_lea.vmem %s856, %s978
                $region79: #{tpu_custom_call.1} parent=73 // loop_footer
                  %s942 = sadd.s32 %s940, 1
                $region80: #{tpu_custom_call.1} parent=73 // loop_footer_branch
                  %939 = sbr.rel target = $region76
                $region81: #{tpu_custom_call.1} parent=73 // loop_exit
                  _
                %s981 = sdiv.u32.pop %s852, 13
                %s982 = srem.u32.pop %s852, 13
                %s983 = smul.u32 %s981, 13
                %s984 = smul.u32 8, %s983
                %s985 = scalar_lea.vmem %s845, %s984 [#allocation2]
                %s986 = smul.u32 8, %s983
                %s987 = scalar_lea.vmem %s856, %s986
                // While loop
                $region82: #{tpu_custom_call.1} parent=73 // loop_pre_header
                  _
                $region83: #{tpu_custom_call.1} parent=73 // loop_header
                  %s989 = sphi 0, %s991
                  %p990 = scmp.ge.s32.totalorder %s989, %s982
                  %s994 = sphi 0, %s1001
                  %s995 = sphi %s985, %s1004
                  %s996 = sphi %s987, %s1005
                $region84: #{tpu_custom_call.1} parent=73 // loop_header_branch
                  %993 = sbr.rel (%p990) target = $region88
                $region85: #{tpu_custom_call.1} parent=73 // loop_body
                  %v997 = vld [vmem:[%s995] sm:$0xff]
                  %998 = vst [vmem:[%s996] sm:$0xff] %v997
                  %s999 = sadd.s32 1, %s994
                  %p1000 = scmp.ge.s32.totalorder %s999, %s982
                  %s1001 = scalar_select %p1000, 0, %s999
                  %s1002 = smul.u32 %s1001, 8
                  %s1003 = smul.u32 %s1001, 8
                  %s1004 = scalar_lea.vmem %s985, %s1002 [#allocation2]
                  %s1005 = scalar_lea.vmem %s987, %s1003
                $region86: #{tpu_custom_call.1} parent=73 // loop_footer
                  %s991 = sadd.s32 %s989, 1
                $region87: #{tpu_custom_call.1} parent=73 // loop_footer_branch
                  %988 = sbr.rel target = $region83
                $region88: #{tpu_custom_call.1} parent=73 // loop_exit
                  _
              $region74: #{tpu_custom_call.1} parent=51 // pred_fallthru
                _
              // Predicated region
              $region89: #{tpu_custom_call.1} parent=51 // pred_check
                _
              $region90: #{tpu_custom_call.1} parent=51 // pred_check_branch
                %1007 = sbr.rel target = $region92
              $region91: #{tpu_custom_call.1} parent=51 // pred_region
                _
              $region92: #{tpu_custom_call.1} parent=51 // pred_fallthru
                _
            $region52: #{tpu_custom_call.1} parent=47 // pred_fallthru
              _
            // Predicated region
            $region53: #{tpu_custom_call.1} parent=47 // pred_check
              _
            $region54: #{tpu_custom_call.1} parent=47 // pred_check_branch
              %863 = sbr.rel target = $region56
            $region55: #{tpu_custom_call.1} parent=47 // pred_region
              %s865 = ssub.s32 256, 1
              %s866 = sdiv.u32.pop %s852, 13
              %s867 = srem.u32.pop %s852, 13
              // While loop
              $region57: #{tpu_custom_call.1} parent=55 // loop_pre_header
                _
              $region58: #{tpu_custom_call.1} parent=55 // loop_header
                %s869 = sphi 0, %s871
                %p870 = scmp.ge.s32.totalorder %s869, %s866
                %s874 = sphi 0, %s905
                %s875 = sphi %s845, %s908
                %s876 = sphi %s856, %s909
              $region59: #{tpu_custom_call.1} parent=55 // loop_header_branch
                %873 = sbr.rel (%p870) target = $region63
              $region60: #{tpu_custom_call.1} parent=55 // loop_body
                %v877 = vld [vmem:[%s875] sm:%s865]
                %878 = vst [vmem:[%s876] sm:%s865] %v877
                %v879 = vld [vmem:[%s875 + $0x8] sm:%s865]
                %880 = vst [vmem:[%s876 + $0x8] sm:%s865] %v879
                %v881 = vld [vmem:[%s875 + $0x10] sm:%s865]
                %882 = vst [vmem:[%s876 + $0x10] sm:%s865] %v881
                %v883 = vld [vmem:[%s875 + $0x18] sm:%s865]
                %884 = vst [vmem:[%s876 + $0x18] sm:%s865] %v883
                %v885 = vld [vmem:[%s875 + $0x20] sm:%s865]
                %886 = vst [vmem:[%s876 + $0x20] sm:%s865] %v885
                %v887 = vld [vmem:[%s875 + $0x28] sm:%s865]
                %888 = vst [vmem:[%s876 + $0x28] sm:%s865] %v887
                %v889 = vld [vmem:[%s875 + $0x30] sm:%s865]
                %890 = vst [vmem:[%s876 + $0x30] sm:%s865] %v889
                %v891 = vld [vmem:[%s875 + $0x38] sm:%s865]
                %892 = vst [vmem:[%s876 + $0x38] sm:%s865] %v891
                %v893 = vld [vmem:[%s875 + $0x40] sm:%s865]
                %894 = vst [vmem:[%s876 + $0x40] sm:%s865] %v893
                %v895 = vld [vmem:[%s875 + $0x48] sm:%s865]
                %896 = vst [vmem:[%s876 + $0x48] sm:%s865] %v895
                %v897 = vld [vmem:[%s875 + $0x50] sm:%s865]
                %898 = vst [vmem:[%s876 + $0x50] sm:%s865] %v897
                %v899 = vld [vmem:[%s875 + $0x58] sm:%s865]
                %900 = vst [vmem:[%s876 + $0x58] sm:%s865] %v899
                %v901 = vld [vmem:[%s875 + $0x60] sm:%s865]
                %902 = vst [vmem:[%s876 + $0x60] sm:%s865] %v901
                %s903 = sadd.s32 1, %s874
                %p904 = scmp.ge.s32.totalorder %s903, %s866
                %s905 = scalar_select %p904, 0, %s903
                %s906 = smul.u32 %s905, 104
                %s907 = smul.u32 %s905, 104
                %s908 = scalar_lea.vmem %s845, %s906 [#allocation2]
                %s909 = scalar_lea.vmem %s856, %s907
              $region61: #{tpu_custom_call.1} parent=55 // loop_footer
                %s871 = sadd.s32 %s869, 1
              $region62: #{tpu_custom_call.1} parent=55 // loop_footer_branch
                %868 = sbr.rel target = $region58
              $region63: #{tpu_custom_call.1} parent=55 // loop_exit
                _
              %s910 = sdiv.u32.pop %s852, 13
              %s911 = srem.u32.pop %s852, 13
              %s912 = smul.u32 %s910, 13
              %s913 = smul.u32 8, %s912
              %s914 = scalar_lea.vmem %s845, %s913 [#allocation2]
              %s915 = smul.u32 8, %s912
              %s916 = scalar_lea.vmem %s856, %s915
              // While loop
              $region64: #{tpu_custom_call.1} parent=55 // loop_pre_header
                _
              $region65: #{tpu_custom_call.1} parent=55 // loop_header
                %s918 = sphi 0, %s920
                %p919 = scmp.ge.s32.totalorder %s918, %s911
                %s923 = sphi 0, %s930
                %s924 = sphi %s914, %s933
                %s925 = sphi %s916, %s934
              $region66: #{tpu_custom_call.1} parent=55 // loop_header_branch
                %922 = sbr.rel (%p919) target = $region70
              $region67: #{tpu_custom_call.1} parent=55 // loop_body
                %v926 = vld [vmem:[%s924] sm:%s865]
                %927 = vst [vmem:[%s925] sm:%s865] %v926
                %s928 = sadd.s32 1, %s923
                %p929 = scmp.ge.s32.totalorder %s928, %s911
                %s930 = scalar_select %p929, 0, %s928
                %s931 = smul.u32 %s930, 8
                %s932 = smul.u32 %s930, 8
                %s933 = scalar_lea.vmem %s914, %s931 [#allocation2]
                %s934 = scalar_lea.vmem %s916, %s932
              $region68: #{tpu_custom_call.1} parent=55 // loop_footer
                %s920 = sadd.s32 %s918, 1
              $region69: #{tpu_custom_call.1} parent=55 // loop_footer_branch
                %917 = sbr.rel target = $region65
              $region70: #{tpu_custom_call.1} parent=55 // loop_exit
                _
            $region56: #{tpu_custom_call.1} parent=47 // pred_fallthru
              _
          $region48: #{tpu_custom_call.1} parent=43 // pred_fallthru
            _
          %1008 = vnop
        $region44: #{tpu_custom_call.1} parent=39 // pred_fallthru
          _
      $region40: #{tpu_custom_call.1} parent=5 // pred_fallthru
        _
      %p1009 = scmp.le.s32.totalorder 2, %s11
      // Predicated region
      $region93: #{tpu_custom_call.1} parent=5 // pred_check
        %p1010 = pneg %p1009
      $region94: #{tpu_custom_call.1} parent=5 // pred_check_branch
        %1012 = sbr.rel (%p1010) target = $region96
      $region95: #{tpu_custom_call.1} parent=5 // pred_region
        %s1013 = ssub.s32 %s11, 2
        // Predicated region
        $region97: #{tpu_custom_call.1} parent=95 // pred_check
          %p1014 = pneg %p155
        $region98: #{tpu_custom_call.1} parent=95 // pred_check_branch
          %1016 = sbr.rel (%p1014) target = $region100
        $region99: #{tpu_custom_call.1} parent=95 // pred_region
          %s1017 = sand.u32 %s140, 1
          %s1018 = sand.u32 %s140, 1
          %s1019 = smul.addr %s1018, 104
          %s1020 = scalar_lea.vmem [#allocation2], %s1019
        $region100: #{tpu_custom_call.1} parent=95 // pred_fallthru
          _
      $region96: #{tpu_custom_call.1} parent=5 // pred_fallthru
        _
    $region6: #{tpu_custom_call.1} parent=1 // loop_footer
      %s15 = sadd.s32 1, %s11
    $region7: #{tpu_custom_call.1} parent=1 // loop_footer_branch
      %10 = sbr.rel target = $region3
    $region8: #{tpu_custom_call.1} parent=1 // loop_exit
      _

</llo_original>
